<compile_context>
chip_gen: v7x
topology: tpu7x:2x2x1
jax: 0.10.0
libtpu: 0.0.40
codegen_flags: <defaults>
</compile_context>

<pallas_src>
import jax
import jax.numpy as jnp
from jax.experimental import pallas as pl
from jax.experimental.pallas import tpu as pltpu


def _round_up(v, m):
    return ((v + m - 1) // m) * m


def _make_kernel(bt, n_pad):
    def _smp_kernel(x_ref, w_ref, b_ref, adj_ref, o_ref, h_ref):
        # x_ref:   (BT, N_pad, F_in)         compute dtype
        # w_ref:   (F_in, F_out_p)           compute dtype
        # b_ref:   (1, F_out_p)              f32
        # adj_ref: (BT, TM, N_pad)           compute dtype
        # o_ref:   (BT, TM, F_out_p)         f32
        # h_ref:   (BT*N_pad, F_out_p) VMEM scratch, resident across row tiles
        f_in = x_ref.shape[-1]

        # Linear projection once per batch tile: the row axis is the innermost grid
        # axis, so program_id(1)==0 is the first step for each batch tile.
        @pl.when(pl.program_id(1) == 0)
        def _():
            xf = x_ref[...].reshape(bt * n_pad, f_in)            # tall matmul: all graphs at once
            h = jnp.dot(xf, w_ref[...], preferred_element_type=jnp.float32)
            h_ref[...] = (h + b_ref[...]).astype(h_ref.dtype)

        # Message passing for this adjacency row tile: out[b] = adj_tile[b] @ h[b].
        for bb in range(bt):                                     # BT is small & static
            h_b = h_ref[pl.ds(bb * n_pad, n_pad), :]
            o_ref[bb] = jnp.dot(adj_ref[bb], h_b,
                                preferred_element_type=jnp.float32).astype(o_ref.dtype)

    return _smp_kernel


def simplicial_message_passing(x, adj, w, b, order=(0,), use_bf16=False):
    """Fused  adj @ (x @ W + b)  — semantics of SimplicialMessagePassingBlock.forward.

    x:   [B, N, F_in]  float32
    adj: [B, N, N]     float32
    w:   [F_in, F_out] float32
    b:   [F_out]       float32
    order: unused by the math (the torch loop only binds x0 = x[0]).
    use_bf16: cast x/adj/W to bf16 (f32 accumulation) for v6e/v7x MXU throughput.
    """
    del order  # TODO(synk): the torch loop over `order` only rebinds x0 and has no output effect.
    B, N, F_in = x.shape
    F_out = w.shape[1]

    # ---- padding: lane-dense (>=128) output, 8-aligned node rows -------------
    F_out_p = _round_up(F_out, 128)
    if N <= 512:
        N_pad = _round_up(N, 8)
        TM = N_pad                      # single row tile, full adjacency block
    else:
        TM = 256                        # row-tile large graphs; keep K (=N_pad) full
        N_pad = _round_up(N, TM)

    compute_dtype = jnp.bfloat16 if use_bf16 else jnp.float32

    x_p = x if N_pad == N else jnp.pad(x, ((0, 0), (0, N_pad - N), (0, 0)))
    adj_p = adj if N_pad == N else jnp.pad(adj, ((0, 0), (0, N_pad - N), (0, N_pad - N)))
    w_p = w if F_out_p == F_out else jnp.pad(w, ((0, 0), (0, F_out_p - F_out)))
    b_p = (b if F_out_p == F_out else jnp.pad(b, (0, F_out_p - F_out))).reshape(1, F_out_p)

    x_p = x_p.astype(compute_dtype)
    adj_p = adj_p.astype(compute_dtype)
    w_p = w_p.astype(compute_dtype)
    b_p = b_p.astype(jnp.float32)

    # ---- batches per grid step: keep >= 2 batch steps (v7x has 2 TCs), bounded
    #      by a VMEM budget for the resident x block + h scratch -----------------
    per_batch_bytes = N_pad * (F_in + F_out_p) * 4
    BT = 1
    for cand in range(1, max(1, B // 2) + 1):
        if B % cand == 0 and cand * per_batch_bytes <= (8 << 20):
            BT = cand

    grid = (B // BT, N_pad // TM)

    # ---- VMEM estimate -> explicit scoped limit (capped for v7x's 64 MiB) ------
    itemsize = jnp.dtype(compute_dtype).itemsize
    est = (2 * BT * N_pad * F_in * itemsize        # x (double-buffered)
           + 2 * BT * TM * N_pad * itemsize        # adj
           + 2 * BT * TM * F_out_p * 4             # out
           + 2 * F_in * F_out_p * itemsize         # W
           + 2 * F_out_p * 4                       # b
           + BT * N_pad * F_out_p * itemsize)      # h scratch
    vmem_limit = max(32 << 20, min(48 << 20, int(est * 1.5)))

    out = pl.pallas_call(
        _make_kernel(BT, N_pad),
        out_shape=jax.ShapeDtypeStruct((B, N_pad, F_out_p), jnp.float32),
        grid_spec=pltpu.PrefetchScalarGridSpec(
            num_scalar_prefetch=0,
            grid=grid,
            in_specs=[
                pl.BlockSpec((BT, N_pad, F_in), lambda bi, ri: (bi, 0, 0)),   # x (resident per batch tile)
                pl.BlockSpec((F_in, F_out_p), lambda bi, ri: (0, 0)),         # W (resident)
                pl.BlockSpec((1, F_out_p), lambda bi, ri: (0, 0)),            # bias (resident)
                pl.BlockSpec((BT, TM, N_pad), lambda bi, ri: (bi, ri, 0)),    # adj row tile
            ],
            out_specs=pl.BlockSpec((BT, TM, F_out_p), lambda bi, ri: (bi, ri, 0)),
            scratch_shapes=[pltpu.VMEM((BT * N_pad, F_out_p), compute_dtype)],
        ),
        compiler_params=pltpu.CompilerParams(
            dimension_semantics=("parallel", "arbitrary"),
            vmem_limit_bytes=vmem_limit),
    )(x_p, w_p, b_p, adj_p)

    return out[:, :N, :F_out]


if __name__ == "__main__":
    # Small shapes consistent with the forward pass.
    B, N, F_IN, F_OUT = 2, 8, 32, 32

    key = jax.random.PRNGKey(0)
    kx, kadj, kw, kb = jax.random.split(key, 4)

    x = jax.random.normal(kx, (B, N, F_IN), dtype=jnp.float32)
    adj = jax.random.normal(kadj, (B, N, N), dtype=jnp.float32)

    # Deterministic nn.Linear-style init (uniform(-1/sqrt(fan_in), 1/sqrt(fan_in))).
    # TODO(synk): self.linear is never declared in the torch module's __init__;
    #             its parameters are created deterministically here instead.
    bound = 1.0 / (F_IN ** 0.5)
    w = jax.random.uniform(kw, (F_IN, F_OUT), jnp.float32, -bound, bound)
    b = jax.random.uniform(kb, (F_OUT,), jnp.float32, -bound, bound)

    out = simplicial_message_passing(x, adj, w, b, order=(0, 1))
    out = jax.block_until_ready(out)

    # Pure-JAX reference check.
    ref = jnp.einsum("bnm,bmf->bnf", adj, jnp.einsum("bnf,fo->bno", x, w) + b)
    assert out.shape == (B, N, F_OUT)
    assert jnp.allclose(out, ref, atol=1e-4, rtol=1e-4), "mismatch vs reference"

    print("KERNEL_OK")
</pallas_src>

<mosaic_0001>
module attributes {stable_mosaic.version = 11 : i64} {
  func.func @_smp_kernel(%arg0: i32, %arg1: i32, %arg2: memref<1x8x32xf32, #tpu.memory_space<vmem>>, %arg3: memref<32x128xf32, #tpu.memory_space<vmem>>, %arg4: memref<1x128xf32, #tpu.memory_space<vmem>>, %arg5: memref<1x8x8xf32, #tpu.memory_space<vmem>>, %arg6: memref<1x8x128xf32, #tpu.memory_space<vmem>>, %arg7: memref<8x128xf32, #tpu.memory_space<vmem>>) attributes {dimension_semantics = [#tpu.dimension_semantics<parallel>, #tpu.dimension_semantics<arbitrary>], iteration_bounds = array<i64: 2, 1>, scalar_prefetch = 0 : i64, scratch_operands = 1 : i64, tpu.core_type = #tpu.core_type<tc>, window_params = [{transform_indices = @transform_0, window_bounds = array<i64: 1, 8, 32>}, {pipeline_mode = #tpu.pipeline_mode<synchronous>, transform_indices = @transform_1, window_bounds = array<i64: 32, 128>}, {pipeline_mode = #tpu.pipeline_mode<synchronous>, transform_indices = @transform_2, window_bounds = array<i64: 1, 128>}, {transform_indices = @transform_3, window_bounds = array<i64: 1, 8, 8>}, {transform_indices = @transform_4, window_bounds = array<i64: 1, 8, 128>}]} {
    %c0_i32 = arith.constant 0 : i32
    %0 = arith.cmpi eq, %arg1, %c0_i32 : i32
    %1 = arith.extui %0 : i1 to i32
    %c0_i32_0 = arith.constant 0 : i32
    %2 = arith.cmpi ne, %1, %c0_i32_0 : i32
    scf.if %2 {
      %c0_8 = arith.constant 0 : index
      %c0_9 = arith.constant 0 : index
      %c0_10 = arith.constant 0 : index
      %10 = vector.load %arg2[%c0_8, %c0_9, %c0_10] : memref<1x8x32xf32, #tpu.memory_space<vmem>>, vector<1x8x32xf32>
      %11 = vector.shape_cast %10 : vector<1x8x32xf32> to vector<8x32xf32>
      %c0_11 = arith.constant 0 : index
      %c0_12 = arith.constant 0 : index
      %12 = vector.load %arg3[%c0_11, %c0_12] : memref<32x128xf32, #tpu.memory_space<vmem>>, vector<32x128xf32>
      %cst_13 = arith.constant dense<0.000000e+00> : vector<8x128xf32>
      %13 = tpu.matmul %11, %12, %cst_13 {dimension_numbers = #tpu.dot_dimension_numbers<[1], [0], [0], [1], [0, 0, 1, 1], [], []>} : vector<8x32xf32>, vector<32x128xf32>, vector<8x128xf32> -> vector<8x128xf32>
      %c0_14 = arith.constant 0 : index
      %c0_15 = arith.constant 0 : index
      %14 = vector.load %arg4[%c0_14, %c0_15] : memref<1x128xf32, #tpu.memory_space<vmem>>, vector<1x128xf32>
      %15 = vector.broadcast %14 : vector<1x128xf32> to vector<8x128xf32>
      %16 = arith.addf %13, %15 : vector<8x128xf32>
      %c0_16 = arith.constant 0 : index
      %c0_17 = arith.constant 0 : index
      %17 = vector.load %arg7[%c0_16, %c0_17] : memref<8x128xf32, #tpu.memory_space<vmem>>, vector<8x128xf32>
      tpu.vector_store %arg7[%c0_16, %c0_17], %16 {strides = array<i32>} : memref<8x128xf32, #tpu.memory_space<vmem>>, vector<8x128xf32>,
    } else {
    }
    %c0 = arith.constant 0 : index
    %c0_1 = arith.constant 0 : index
    %3 = vector.load %arg7[%c0, %c0_1] : memref<8x128xf32, #tpu.memory_space<vmem>>, vector<8x128xf32>
    %c0_2 = arith.constant 0 : index
    %c0_3 = arith.constant 0 : index
    %c0_4 = arith.constant 0 : index
    %4 = vector.load %arg5[%c0_2, %c0_3, %c0_4] : memref<1x8x8xf32, #tpu.memory_space<vmem>>, vector<1x8x8xf32>
    %5 = vector.shape_cast %4 : vector<1x8x8xf32> to vector<8x8xf32>
    %cst = arith.constant dense<0.000000e+00> : vector<8x128xf32>
    %6 = tpu.matmul %5, %3, %cst {dimension_numbers = #tpu.dot_dimension_numbers<[1], [0], [0], [1], [0, 0, 1, 1], [], []>} : vector<8x8xf32>, vector<8x128xf32>, vector<8x128xf32> -> vector<8x128xf32>
    %c0_5 = arith.constant 0 : index
    %c0_6 = arith.constant 0 : index
    %c0_7 = arith.constant 0 : index
    %7 = vector.load %arg6[%c0_5, %c0_6, %c0_7] : memref<1x8x128xf32, #tpu.memory_space<vmem>>, vector<1x8x128xf32>
    %8 = vector.shape_cast %7 : vector<1x8x128xf32> to vector<8x128xf32>
    %9 = vector.shape_cast %6 : vector<8x128xf32> to vector<1x8x128xf32>
    tpu.vector_store %arg6[%c0_5, %c0_6, %c0_7], %9 {strides = array<i32>} : memref<1x8x128xf32, #tpu.memory_space<vmem>>, vector<1x8x128xf32>,
    return
  }
  func.func @transform_0(%arg0: i32, %arg1: i32) -> (i32, i32, i32) {
    %c0_i32 = arith.constant 0 : i32
    %c0_i32_0 = arith.constant 0 : i32
    %c0_i32_1 = arith.constant 0 : i32
    return %arg0, %c0_i32, %c0_i32_0 : i32, i32, i32
  }
  func.func @transform_1(%arg0: i32, %arg1: i32) -> (i32, i32) {
    %c0_i32 = arith.constant 0 : i32
    %c0_i32_0 = arith.constant 0 : i32
    %c0_i32_1 = arith.constant 0 : i32
    return %c0_i32, %c0_i32_0 : i32, i32
  }
  func.func @transform_2(%arg0: i32, %arg1: i32) -> (i32, i32) {
    %c0_i32 = arith.constant 0 : i32
    %c0_i32_0 = arith.constant 0 : i32
    %c0_i32_1 = arith.constant 0 : i32
    return %c0_i32, %c0_i32_0 : i32, i32
  }
  func.func @transform_3(%arg0: i32, %arg1: i32) -> (i32, i32, i32) {
    %c0_i32 = arith.constant 0 : i32
    %c0_i32_0 = arith.constant 0 : i32
    return %arg0, %arg1, %c0_i32 : i32, i32, i32
  }
  func.func @transform_4(%arg0: i32, %arg1: i32) -> (i32, i32, i32) {
    %c0_i32 = arith.constant 0 : i32
    %c0_i32_0 = arith.constant 0 : i32
    return %arg0, %arg1, %c0_i32 : i32, i32, i32
  }
}

</mosaic_0001>

<llo_original>
// kernel: tpu_custom_call.1
$region0: #{tpu_custom_call.1}
  #allocation0 [shape = 'u32[]', space=smem, size = 0x4, offset = 0x4, fixed_abs, tag = 'smem constant byte address 0x4 - core index']
  #allocation1 [shape = 'u32[144,128]{1,0:T(1,128)}', space=vmem, size = 0x12000, scoped, tag = 'internal scratch']
  #allocation2 [shape = 'f32[8,128]{1,0:T(8,128)}', space=vmem, size = 0x1000, scoped, tag = 'scratch operand']
  %s0 = inlined_call_operand.hbm [shape: f32[2,8,32], index: 0, kind: input, shape index: {}]
  %s1 = inlined_call_operand.hbm [shape: f32[32,128], index: 1, kind: input, shape index: {}]
  %s2 = inlined_call_operand.vmem [shape: f32[1,128], index: 2, kind: input, shape index: {}]
  %s3 = inlined_call_operand.hbm [shape: f32[2,8,8], index: 3, kind: input, shape index: {}]
  %s4 = inlined_call_operand.hbm [shape: f32[2,8,128], index: 4, kind: output, shape index: {}]
  %s5 = sld [smem:[#allocation0]]
  $region65: #{tpu_custom_call.1} parent=0
    _
  %s7 = ssub.s32 1, %s5
  %s8 = scalar_select 0, %s7, %s5
  $region1: #{tpu_custom_call.1} parent=0
    #allocation3 [shape = 'u8[8192]{0}', space=vmem, size = 0x2000, scoped, tag = 'input window, operand 0']
    #allocation4 [shape = 's32[2]{0}', space=sflag, size = 0x8, scoped, tag = 'scoped memory for tpu_custom_call.1']
    #allocation5 [shape = 's32[2]{0}', space=sflag, size = 0x8, scoped, tag = 'scoped memory for tpu_custom_call.1']
    #allocation6 [shape = 'u8[16384]{0}', space=vmem, size = 0x4000, scoped, tag = 'input window, operand 1, single buffered']
    #allocation7 [shape = 's32[1]{0}', space=sflag, size = 0x4, scoped, tag = 'scoped memory for tpu_custom_call.1']
    #allocation8 [shape = 'u8[8192]{0}', space=vmem, size = 0x2000, scoped, tag = 'input window, operand 3']
    #allocation9 [shape = 'u8[8192]{0}', space=vmem, size = 0x2000, scoped, tag = 'output window, operand 0']
    %9 = vsyncpa [#allocation4], 0
    %s10 = scalar_lea.sflag [#allocation4], 1
    %11 = vsyncpa %s10, 0
    %12 = vsyncpa [#allocation7], 0
    %13 = vsyncpa [#allocation5], 0
    %s14 = scalar_lea.sflag [#allocation5], 1
    %15 = vsyncpa %s14, 0
    loop: start=0, step=1, limit=4
    $region2: #{tpu_custom_call.1} parent=1 // loop_pre_header
      _
    $region3: #{tpu_custom_call.1} parent=1 // loop_header
      %s17 = sphi 0, %s21
      %p18 = scmp.ge.s32.totalorder %s17, 4
      %s24 = sphi 0, %s36
      %s25 = sphi 0, %s32
      %s26 = sphi 0, %s24
      %s27 = sphi 0, %s25
      %s28 = sphi 0, %s26
      %s29 = sphi 0, %s27
      %s39 = sphi 0, %s41
      %s42 = sphi 0, %s39
      %s43 = sphi 0, %s42
      %s59 = sphi 0, %s43
      %s63 = sphi 0, %s63
      %s65 = sphi 0, %s63
      %s66 = sphi 0, %s65
      %s80 = sphi 0, %s66
      %s84 = sphi 0, %s84
      %s86 = sphi 0, %s84
      %s87 = sphi 0, %s86
      %s101 = sphi 0, %s87
      %s109 = sphi 0, %s111
      %s112 = sphi 0, %s109
      %s113 = sphi 0, %s112
      %s129 = sphi 0, %s113
      %s137 = sphi 0, %s139
      %s140 = sphi 0, %s137
      %s141 = sphi 0, %s140
      %s157 = sphi 0, %s141
    $region4: #{tpu_custom_call.1} parent=1 // loop_header_branch
      %20 = sbr.rel (%p18) target = $region8
    $region5: #{tpu_custom_call.1} parent=1 // loop_body
      %s22 = ssub.s32 %s17, 1
      %s23 = ssub.s32 %s17, 2
      %s30 = sadd.s32 1, %s25
      %p31 = scmp.ge.s32.totalorder %s30, 1
      %s32 = scalar_select %p31, 0, %s30
      %s33 = sadd.s32 1, %s24
      %s34 = scalar_select %p31, %s33, %s24
      %p35 = scmp.ge.s32.totalorder %s34, 2
      %s36 = scalar_select %p35, 0, %s34
      %s37 = ssub.s32 %s24, %s36
      %p38 = scmp.eq.s32.totalorder %s37, 0
      %s40 = sadd.s32 %s39, 1
      %s41 = scalar_select %p38, %s39, %s40
      %p44 = pneg %p38
      %p45 = scmp.eq.s32.totalorder %s17, 1
      %p46 = por %p44, %p45
      %p47 = scmp.ne.s32.totalorder %s39, %s42
      %p48 = scmp.eq.s32.totalorder %s17, 0
      %p49 = por %p47, %p48
      %p50 = scmp.ne.s32.totalorder %s39, %s42
      %p51 = scmp.eq.s32.totalorder %s22, 1
      %p52 = por %p50, %p51
      %p53 = scmp.ne.s32.totalorder %s42, %s43
      %p54 = scmp.eq.s32.totalorder %s22, 0
      %p55 = por %p53, %p54
      %p56 = scmp.ne.s32.totalorder %s42, %s43
      %p57 = scmp.eq.s32.totalorder %s23, 1
      %p58 = por %p56, %p57
      %p60 = scmp.ne.s32.totalorder %s43, %s59
      %p61 = scmp.eq.s32.totalorder %s23, 0
      %p62 = por %p60, %p61
      %s64 = sadd.s32 %s63, 1
      %p67 = scmp.eq.s32.totalorder %s17, 1
      %p68 = scmp.ne.s32.totalorder %s63, %s65
      %p69 = scmp.eq.s32.totalorder %s17, 0
      %p70 = por %p68, %p69
      %p71 = scmp.ne.s32.totalorder %s63, %s65
      %p72 = scmp.eq.s32.totalorder %s22, 1
      %p73 = por %p71, %p72
      %p74 = scmp.ne.s32.totalorder %s65, %s66
      %p75 = scmp.eq.s32.totalorder %s22, 0
      %p76 = por %p74, %p75
      %p77 = scmp.ne.s32.totalorder %s65, %s66
      %p78 = scmp.eq.s32.totalorder %s23, 1
      %p79 = por %p77, %p78
      %p81 = scmp.ne.s32.totalorder %s66, %s80
      %p82 = scmp.eq.s32.totalorder %s23, 0
      %p83 = por %p81, %p82
      %s85 = sadd.s32 %s84, 1
      %p88 = scmp.eq.s32.totalorder %s17, 1
      %p89 = scmp.ne.s32.totalorder %s84, %s86
      %p90 = scmp.eq.s32.totalorder %s17, 0
      %p91 = por %p89, %p90
      %p92 = scmp.ne.s32.totalorder %s84, %s86
      %p93 = scmp.eq.s32.totalorder %s22, 1
      %p94 = por %p92, %p93
      %p95 = scmp.ne.s32.totalorder %s86, %s87
      %p96 = scmp.eq.s32.totalorder %s22, 0
      %p97 = por %p95, %p96
      %p98 = scmp.ne.s32.totalorder %s86, %s87
      %p99 = scmp.eq.s32.totalorder %s23, 1
      %p100 = por %p98, %p99
      %p102 = scmp.ne.s32.totalorder %s87, %s101
      %p103 = scmp.eq.s32.totalorder %s23, 0
      %p104 = por %p102, %p103
      %s105 = ssub.s32 %s24, %s36
      %s106 = ssub.s32 %s25, %s32
      %s107 = sor.u32 %s105, %s106
      %p108 = scmp.eq.s32.totalorder %s107, 0
      %s110 = sadd.s32 %s109, 1
      %s111 = scalar_select %p108, %s109, %s110
      %p114 = pneg %p108
      %p115 = scmp.eq.s32.totalorder %s17, 1
      %p116 = por %p114, %p115
      %p117 = scmp.ne.s32.totalorder %s109, %s112
      %p118 = scmp.eq.s32.totalorder %s17, 0
      %p119 = por %p117, %p118
      %p120 = scmp.ne.s32.totalorder %s109, %s112
      %p121 = scmp.eq.s32.totalorder %s22, 1
      %p122 = por %p120, %p121
      %p123 = scmp.ne.s32.totalorder %s112, %s113
      %p124 = scmp.eq.s32.totalorder %s22, 0
      %p125 = por %p123, %p124
      %p126 = scmp.ne.s32.totalorder %s112, %s113
      %p127 = scmp.eq.s32.totalorder %s23, 1
      %p128 = por %p126, %p127
      %p130 = scmp.ne.s32.totalorder %s113, %s129
      %p131 = scmp.eq.s32.totalorder %s23, 0
      %p132 = por %p130, %p131
      %s133 = ssub.s32 %s24, %s36
      %s134 = ssub.s32 %s25, %s32
      %s135 = sor.u32 %s133, %s134
      %p136 = scmp.eq.s32.totalorder %s135, 0
      %s138 = sadd.s32 %s137, 1
      %s139 = scalar_select %p136, %s137, %s138
      %p142 = pneg %p136
      %p143 = scmp.eq.s32.totalorder %s17, 1
      %p144 = por %p142, %p143
      %p145 = scmp.ne.s32.totalorder %s137, %s140
      %p146 = scmp.eq.s32.totalorder %s17, 0
      %p147 = por %p145, %p146
      %p148 = scmp.ne.s32.totalorder %s137, %s140
      %p149 = scmp.eq.s32.totalorder %s22, 1
      %p150 = por %p148, %p149
      %p151 = scmp.ne.s32.totalorder %s140, %s141
      %p152 = scmp.eq.s32.totalorder %s22, 0
      %p153 = por %p151, %p152
      %p154 = scmp.ne.s32.totalorder %s140, %s141
      %p155 = scmp.eq.s32.totalorder %s23, 1
      %p156 = por %p154, %p155
      %p158 = scmp.ne.s32.totalorder %s141, %s157
      %p159 = scmp.eq.s32.totalorder %s23, 0
      %p160 = por %p158, %p159
      %p161 = scmp.le.s32.totalorder 1, %s17
      %p162 = scmp.lt.s32.totalorder %s17, 3
      %p163 = pnand %p161, %p162
      %p164 = pneg %p163
      // Predicated region
      $region9: #{tpu_custom_call.1} parent=5 // pred_check
        _
      $region10: #{tpu_custom_call.1} parent=5 // pred_check_branch
        %166 = sbr.rel (%p163) target = $region12
      $region11: #{tpu_custom_call.1} parent=5 // pred_region
        %s167 = ssub.s32 %s17, 1
        // Predicated region
        $region13: #{tpu_custom_call.1} parent=11 // pred_check
          %p168 = pneg %p76
        $region14: #{tpu_custom_call.1} parent=11 // pred_check_branch
          %170 = sbr.rel (%p168) target = $region16
        $region15: #{tpu_custom_call.1} parent=11 // pred_region
          %s172 = ssub.s32 512, 512
          %173 = vsyncadd [#allocation7], %s172
          %s174 = sshll.u32 [#allocation6], 4
          %s175 = int_to_ptr.vmem [resolvable:$true] %s174
          %180 = dma.hbm_to_vmem [thread:$0]  %s1, 512, %s175, [#allocation7], 128, 128, 8
        $region16: #{tpu_custom_call.1} parent=11 // pred_fallthru
          _
        // Predicated region
        $region17: #{tpu_custom_call.1} parent=11 // pred_check
          %p181 = pneg %p97
        $region18: #{tpu_custom_call.1} parent=11 // pred_check_branch
          %183 = sbr.rel (%p181) target = $region20
        $region19: #{tpu_custom_call.1} parent=11 // pred_region
          _
        $region20: #{tpu_custom_call.1} parent=11 // pred_fallthru
          _
      $region12: #{tpu_custom_call.1} parent=5 // pred_fallthru
        _
      %p184 = scmp.lt.s32.totalorder %s17, 2
      // Predicated region
      $region21: #{tpu_custom_call.1} parent=5 // pred_check
        %p185 = pneg %p184
      $region22: #{tpu_custom_call.1} parent=5 // pred_check_branch
        %187 = sbr.rel (%p185) target = $region24
      $region23: #{tpu_custom_call.1} parent=5 // pred_region
        // Predicated region
        $region25: #{tpu_custom_call.1} parent=23 // pred_check
          %p188 = pneg %p49
        $region26: #{tpu_custom_call.1} parent=23 // pred_check_branch
          %190 = sbr.rel (%p188) target = $region28
        $region27: #{tpu_custom_call.1} parent=23 // pred_region
          %s191 = sand.u32 %s17, 1
          %s192 = scalar_lea.sflag [#allocation4], %s191
          %s193 = sand.u32 %s39, 1
          %s194 = smul.addr %s193, 8
          %s195 = scalar_lea.vmem [#allocation3], %s194
          %s197 = ssub.s32 128, 128
          %198 = vsyncadd %s192, %s197
          %s199 = smul.addr %s24, 128
          %s200 = scalar_lea.hbm %s0, %s199
          %s202 = sshll.u32 %s195, 4
          %s203 = int_to_ptr.vmem [resolvable:$true] %s202
          %205 = dma.hbm_to_vmem [thread:$0]  %s200, 128, %s203, %s192
        $region28: #{tpu_custom_call.1} parent=23 // pred_fallthru
          _
        // Predicated region
        $region29: #{tpu_custom_call.1} parent=23 // pred_check
          %p206 = pneg %p119
        $region30: #{tpu_custom_call.1} parent=23 // pred_check_branch
          %208 = sbr.rel (%p206) target = $region32
        $region31: #{tpu_custom_call.1} parent=23 // pred_region
          %s209 = sand.u32 %s17, 1
          %s210 = scalar_lea.sflag [#allocation4], %s209
          %s211 = sand.u32 %s109, 1
          %s212 = smul.addr %s211, 8
          %s213 = scalar_lea.vmem [#allocation8], %s212
          %s215 = ssub.s32 128, 128
          %216 = vsyncadd %s210, %s215
          %s217 = sadd.s32 %s25, %s24
          %s218 = smul.addr %s217, 128
          %s219 = scalar_lea.hbm %s3, %s218
          %s221 = sshll.u32 %s213, 4
          %s222 = int_to_ptr.vmem [resolvable:$true] %s221
          %224 = dma.hbm_to_vmem [thread:$0]  %s219, 128, %s222, %s210
        $region32: #{tpu_custom_call.1} parent=23 // pred_fallthru
          _
      $region24: #{tpu_custom_call.1} parent=5 // pred_fallthru
        _
      %p225 = scmp.le.s32.totalorder 1, %s17
      %p226 = scmp.lt.s32.totalorder %s17, 3
      %p227 = pnand %p225, %p226
      %p228 = pneg %p227
      // Predicated region
      $region33: #{tpu_custom_call.1} parent=5 // pred_check
        _
      $region34: #{tpu_custom_call.1} parent=5 // pred_check_branch
        %230 = sbr.rel (%p227) target = $region36
      $region35: #{tpu_custom_call.1} parent=5 // pred_region
        %s231 = ssub.s32 %s17, 1
        %s232 = sand.u32 %s22, 1
        %s233 = scalar_lea.sflag [#allocation4], %s232
        %s234 = sand.u32 %s42, 1
        %s235 = smul.addr %s234, 8
        %s236 = scalar_lea.vmem [#allocation3], %s235
        // Predicated region
        $region37: #{tpu_custom_call.1} parent=35 // pred_check
          %p237 = pneg %p55
        $region38: #{tpu_custom_call.1} parent=35 // pred_check_branch
          %239 = sbr.rel (%p237) target = $region40
        $region39: #{tpu_custom_call.1} parent=35 // pred_region
          %240 = dma.done %s233, 128
        $region40: #{tpu_custom_call.1} parent=35 // pred_fallthru
          _
        // Predicated region
        $region41: #{tpu_custom_call.1} parent=35 // pred_check
          %p241 = pneg %p76
        $region42: #{tpu_custom_call.1} parent=35 // pred_check_branch
          %243 = sbr.rel (%p241) target = $region44
        $region43: #{tpu_custom_call.1} parent=35 // pred_region
          %244 = dma.done [#allocation7], 512
        $region44: #{tpu_custom_call.1} parent=35 // pred_fallthru
          _
        %s245 = sand.u32 %s22, 1
        %s246 = scalar_lea.sflag [#allocation4], %s245
        %s247 = sand.u32 %s112, 1
        %s248 = smul.addr %s247, 8
        %s249 = scalar_lea.vmem [#allocation8], %s248
        // Predicated region
        $region45: #{tpu_custom_call.1} parent=35 // pred_check
          %p250 = pneg %p125
        $region46: #{tpu_custom_call.1} parent=35 // pred_check_branch
          %252 = sbr.rel (%p250) target = $region48
        $region47: #{tpu_custom_call.1} parent=35 // pred_region
          %253 = dma.done %s246, 128
        $region48: #{tpu_custom_call.1} parent=35 // pred_fallthru
          _
        %s254 = sand.u32 %s22, 1
        %s255 = scalar_lea.sflag [#allocation4], %s254
        %s256 = sand.u32 %s42, 1
        %s257 = smul.addr %s256, 8
        %s258 = scalar_lea.vmem [#allocation3], %s257
        %p259 = pneg %p55
        %p260 = pneg %p52
        %p261 = pneg %p76
        %p262 = pneg %p73
        %p263 = pneg %p97
        %p264 = pneg %p94
        %s265 = sand.u32 %s22, 1
        %s266 = scalar_lea.sflag [#allocation4], %s265
        %s267 = sand.u32 %s112, 1
        %s268 = smul.addr %s267, 8
        %s269 = scalar_lea.vmem [#allocation8], %s268
        %p270 = pneg %p125
        %p271 = pneg %p122
        %p272 = pneg %p153
        %p273 = pneg %p150
        %s274 = sand.u32 %s140, 1
        %s275 = scalar_lea.sflag [#allocation5], %s274
        %s276 = sand.u32 %s140, 1
        %s277 = smul.addr %s276, 8
        %s278 = scalar_lea.vmem [#allocation9], %s277
        %p279 = scmp.eq.s32.totalorder %s27, 0
        // Predicated region
        $region49: #{tpu_custom_call.1} parent=35 // pred_check
          %p280 = pneg %p279
        $region50: #{tpu_custom_call.1} parent=35 // pred_check_branch
          %282 = sbr.rel (%p280) target = $region52
        $region51: #{tpu_custom_call.1} parent=35 // pred_region
          %v283 = vld [vmem:[%s236] sm:$0xff]
          %v284 = vld [vmem:[#allocation6] sm:$0xff]
          %v285 = vld [vmem:[#allocation6 + $0x8] sm:$0xff]
          %v286 = vld [vmem:[#allocation6 + $0x10] sm:$0xff]
          %v287 = vld [vmem:[#allocation6 + $0x18] sm:$0xff]
          %v288 = vld [vmem:[%s2] sm:$0x1]
          %v290 = vlaneseq
          %v291 = vshrl.u32 %v290, 7
          %v292 = vsub.s32 0, %v291
          %v293 = vrot.slane %v288, %v292
          %vm295 = vcmask 261120
          %v297 = vsel %vm295, %v283, 0
          %299 = vmatprep.subr.mxu0 0.0
          %300 = vmatpush1.msra.mxu0 %v284
          %301 = vmatprep.subr.mxu0 0.0
          %302 = vmatpush1.msra.mxu0 %v285
          %303 = vmatprep.subr.mxu0 0.0
          %304 = vmatpush1.msra.mxu0 %v286
          %305 = vmatprep.subr.mxu0 0.0
          %306 = vmatpush1.msra.mxu0 %v287
          %307 = vmatprep.subr.mxu0 0.0
          %308 = vmatpush1.msra.mxu0 0.0
          %309 = vmatprep.subr.mxu0 0.0
          %310 = vmatpush1.msra.mxu0 0.0
          %311 = vmatprep.subr.mxu0 0.0
          %312 = vmatpush1.msra.mxu0 0.0
          %313 = vmatprep.subr.mxu0 0.0
          %314 = vmatpush1.msra.mxu0 0.0
          %315 = vmatprep.subr.mxu0 0.0
          %316 = vmatpush1.msra.mxu0 0.0
          %317 = vmatprep.subr.mxu0 0.0
          %318 = vmatpush1.msra.mxu0 0.0
          %319 = vmatprep.subr.mxu0 0.0
          %320 = vmatpush1.msra.mxu0 0.0
          %321 = vmatprep.subr.mxu0 0.0
          %322 = vmatpush1.msra.mxu0 0.0
          %323 = vmatprep.subr.mxu0 0.0
          %324 = vmatpush1.msra.mxu0 0.0
          %325 = vmatprep.subr.mxu0 0.0
          %326 = vmatpush1.msra.mxu0 0.0
          %327 = vmatprep.subr.mxu0 0.0
          %328 = vmatpush1.msra.mxu0 0.0
          %329 = vmatprep.subr.mxu0 0.0
          %330 = vmatpush1.msra.mxu0 0.0
          %331 = vmatprep.subr.mxu0 0.0
          %332 = vmatpush1.msra.mxu0 0.0
          %333 = vmatprep.subr.mxu0 0.0
          %334 = vmatpush1.msra.mxu0 0.0
          %335 = vmatprep.subr.mxu0 0.0
          %336 = vmatpush1.msra.mxu0 0.0
          %337 = vmatprep.subr.mxu0 0.0
          %338 = vmatpush1.msra.mxu0 0.0
          %339 = vmatprep.subr.mxu0 0.0
          %340 = vmatpush1.msra.mxu0 0.0
          %341 = vmatprep.subr.mxu0 0.0
          %342 = vmatpush1.msra.mxu0 0.0
          %343 = vmatprep.subr.mxu0 0.0
          %344 = vmatpush1.msra.mxu0 0.0
          %345 = vmatprep.subr.mxu0 0.0
          %346 = vmatpush1.msra.mxu0 0.0
          %347 = vmatprep.subr.mxu0 0.0
          %348 = vmatpush1.msra.mxu0 0.0
          %349 = vmatprep.subr.mxu0 0.0
          %350 = vmatpush1.msra.mxu0 0.0
          %351 = vmatprep.subr.mxu0 0.0
          %352 = vmatpush1.msra.mxu0 0.0
          %353 = vmatprep.subr.mxu0 0.0
          %354 = vmatpush1.msra.mxu0 0.0
          %355 = vmatprep.subr.mxu0 0.0
          %356 = vmatpush1.msra.mxu0 0.0
          %357 = vmatprep.subr.mxu0 0.0
          %358 = vmatpush1.msra.mxu0 0.0
          %359 = vmatprep.subr.mxu0 0.0
          %360 = vmatpush1.msra.mxu0 0.0
          %361 = vmatprep.subr.mxu0 0.0
          %362 = vmatpush1.msra.mxu0 0.0
          %363 = vmatprep.mubr.f32.mxu0 0.0
          %364 = vmatmul.mubr.f32.gmra.mrb[0].mxu0 %v297
          %v365 = vpop.f32.mrb[0].mxu0
          %v366 = vadd.f32 %v293, %v365
          %v367 = vpop.f32.mrb[0].mxu0
          %368 = vdwg.mxu0
          %369 = vst [vmem:[#allocation2] sm:$0xff] %v366
        $region52: #{tpu_custom_call.1} parent=35 // pred_fallthru
          _
        %v370 = vld [vmem:[#allocation2] sm:$0xff]
        %v371 = vld [vmem:[%s249] sm:$0xff]
        %vm372 = vcmask 64512
        %v374 = vsel %vm372, %v371, 0
        %376 = vmatprep.subr.mxu0 0.0
        %377 = vmatpush1.msra.mxu0 %v370
        %378 = vmatprep.subr.mxu0 0.0
        %379 = vmatpush1.msra.mxu0 0.0
        %380 = vmatprep.subr.mxu0 0.0
        %381 = vmatpush1.msra.mxu0 0.0
        %382 = vmatprep.subr.mxu0 0.0
        %383 = vmatpush1.msra.mxu0 0.0
        %384 = vmatprep.subr.mxu0 0.0
        %385 = vmatpush1.msra.mxu0 0.0
        %386 = vmatprep.subr.mxu0 0.0
        %387 = vmatpush1.msra.mxu0 0.0
        %388 = vmatprep.subr.mxu0 0.0
        %389 = vmatpush1.msra.mxu0 0.0
        %390 = vmatprep.subr.mxu0 0.0
        %391 = vmatpush1.msra.mxu0 0.0
        %392 = vmatprep.subr.mxu0 0.0
        %393 = vmatpush1.msra.mxu0 0.0
        %394 = vmatprep.subr.mxu0 0.0
        %395 = vmatpush1.msra.mxu0 0.0
        %396 = vmatprep.subr.mxu0 0.0
        %397 = vmatpush1.msra.mxu0 0.0
        %398 = vmatprep.subr.mxu0 0.0
        %399 = vmatpush1.msra.mxu0 0.0
        %400 = vmatprep.subr.mxu0 0.0
        %401 = vmatpush1.msra.mxu0 0.0
        %402 = vmatprep.subr.mxu0 0.0
        %403 = vmatpush1.msra.mxu0 0.0
        %404 = vmatprep.subr.mxu0 0.0
        %405 = vmatpush1.msra.mxu0 0.0
        %406 = vmatprep.subr.mxu0 0.0
        %407 = vmatpush1.msra.mxu0 0.0
        %408 = vmatprep.subr.mxu0 0.0
        %409 = vmatpush1.msra.mxu0 0.0
        %410 = vmatprep.subr.mxu0 0.0
        %411 = vmatpush1.msra.mxu0 0.0
        %412 = vmatprep.subr.mxu0 0.0
        %413 = vmatpush1.msra.mxu0 0.0
        %414 = vmatprep.subr.mxu0 0.0
        %415 = vmatpush1.msra.mxu0 0.0
        %416 = vmatprep.subr.mxu0 0.0
        %417 = vmatpush1.msra.mxu0 0.0
        %418 = vmatprep.subr.mxu0 0.0
        %419 = vmatpush1.msra.mxu0 0.0
        %420 = vmatprep.subr.mxu0 0.0
        %421 = vmatpush1.msra.mxu0 0.0
        %422 = vmatprep.subr.mxu0 0.0
        %423 = vmatpush1.msra.mxu0 0.0
        %424 = vmatprep.subr.mxu0 0.0
        %425 = vmatpush1.msra.mxu0 0.0
        %426 = vmatprep.subr.mxu0 0.0
        %427 = vmatpush1.msra.mxu0 0.0
        %428 = vmatprep.subr.mxu0 0.0
        %429 = vmatpush1.msra.mxu0 0.0
        %430 = vmatprep.subr.mxu0 0.0
        %431 = vmatpush1.msra.mxu0 0.0
        %432 = vmatprep.subr.mxu0 0.0
        %433 = vmatpush1.msra.mxu0 0.0
        %434 = vmatprep.subr.mxu0 0.0
        %435 = vmatpush1.msra.mxu0 0.0
        %436 = vmatprep.subr.mxu0 0.0
        %437 = vmatpush1.msra.mxu0 0.0
        %438 = vmatprep.subr.mxu0 0.0
        %439 = vmatpush1.msra.mxu0 0.0
        %440 = vmatprep.mubr.f32.mxu0 0.0
        %441 = vmatmul.mubr.f32.gmra.mrb[0].mxu0 %v374
        %v442 = vpop.f32.mrb[0].mxu0
        %v443 = vadd.f32 0.0, %v442
        %v444 = vpop.f32.mrb[0].mxu0
        %445 = vdwg.mxu0
        %446 = vst [vmem:[%s278] sm:$0xff] %v443
        %s447 = sand.u32 %s140, 1
        %s448 = scalar_lea.sflag [#allocation5], %s447
        %s449 = sand.u32 %s140, 1
        %s450 = smul.addr %s449, 8
        %s451 = scalar_lea.vmem [#allocation9], %s450
        // Predicated region
        $region53: #{tpu_custom_call.1} parent=35 // pred_check
          %p452 = pneg %p150
        $region54: #{tpu_custom_call.1} parent=35 // pred_check_branch
          %454 = sbr.rel (%p452) target = $region56
        $region55: #{tpu_custom_call.1} parent=35 // pred_region
          %s456 = ssub.s32 128, 128
          %457 = vsyncadd %s448, %s456
          %s458 = sadd.s32 %s27, %s26
          %s459 = smul.addr %s458, 128
          %s460 = scalar_lea.hbm %s4, %s459
          %s462 = sshll.u32 %s451, 4
          %s463 = int_to_ptr.vmem [resolvable:$true] %s462
          %465 = dma.vmem_to_hbm [thread:$0]  %s463, 128, %s460, %s448
        $region56: #{tpu_custom_call.1} parent=35 // pred_fallthru
          _
      $region36: #{tpu_custom_call.1} parent=5 // pred_fallthru
        _
      %p466 = scmp.le.s32.totalorder 2, %s17
      // Predicated region
      $region57: #{tpu_custom_call.1} parent=5 // pred_check
        %p467 = pneg %p466
      $region58: #{tpu_custom_call.1} parent=5 // pred_check_branch
        %469 = sbr.rel (%p467) target = $region60
      $region59: #{tpu_custom_call.1} parent=5 // pred_region
        %s470 = ssub.s32 %s17, 2
        // Predicated region
        $region61: #{tpu_custom_call.1} parent=59 // pred_check
          %p471 = pneg %p156
        $region62: #{tpu_custom_call.1} parent=59 // pred_check_branch
          %473 = sbr.rel (%p471) target = $region64
        $region63: #{tpu_custom_call.1} parent=59 // pred_region
          %s474 = sand.u32 %s141, 1
          %s475 = scalar_lea.sflag [#allocation5], %s474
          %s476 = sand.u32 %s141, 1
          %s477 = smul.addr %s476, 8
          %s478 = scalar_lea.vmem [#allocation9], %s477
          %479 = dma.done %s475, 128
        $region64: #{tpu_custom_call.1} parent=59 // pred_fallthru
          _
      $region60: #{tpu_custom_call.1} parent=5 // pred_fallthru
        _
    $region6: #{tpu_custom_call.1} parent=1 // loop_footer
      %s21 = sadd.s32 1, %s17
    $region7: #{tpu_custom_call.1} parent=1 // loop_footer_branch
      %16 = sbr.rel target = $region3
    $region8: #{tpu_custom_call.1} parent=1 // loop_exit
      _
    %480 = vsyncpa [#allocation4], 1
    %s481 = scalar_lea.sflag [#allocation4], 1
    %482 = vsyncpa %s481, 1
    %483 = vsyncpa [#allocation7], 1
    %484 = vsyncpa [#allocation5], 1
    %s485 = scalar_lea.sflag [#allocation5], 1
    %486 = vsyncpa %s485, 1

</llo_original>
